<compile_context>
chip_gen: v7x
topology: tpu7x:2x2x1
jax: 0.10.0
libtpu: 0.0.40
codegen_flags: <defaults>
</compile_context>

<pallas_src>
import functools

import jax
import jax.numpy as jnp
from jax.experimental import pallas as pl
from jax.experimental.pallas import tpu as pltpu


def _round_up(x: int, m: int) -> int:
    return ((x + m - 1) // m) * m


def _pad2d(a, rows: int, cols: int):
    """Zero-pad a 2D array up to (rows, cols); no-op (no copy) if already aligned."""
    r, c = a.shape
    if r == rows and c == cols:
        return a
    return jnp.pad(a, ((0, rows - r), (0, cols - c)))


def _vmem_budget_bytes() -> int:
    """~75% of physical VMEM per core (128 MiB v5e/v6e, 64 MiB v7x)."""
    try:
        cap = int(pltpu.get_tpu_info().vmem_capacity_bytes)
    except Exception:
        cap = 64 * 1024 * 1024  # conservative (v7x-sized) fallback
    return (cap * 3) // 4


_RESIDENT_BUFS = 2  # BlockSpec inputs are double-buffered by default.


# ----------------------------------------------------------------------------
# Pass 1: h = x @ W1 (materialized) + per-tile BatchNorm partial statistics.
# Fully parallel over the batch grid (per-tile partial outputs, no accumulator).
# ----------------------------------------------------------------------------
def bn_stats_kernel(x_ref, w1_ref, h_ref, psum_ref, pssq_ref):
    # MXU matmul with f32 accumulation; inputs fed in the caller's dtype.
    h = jnp.dot(x_ref[...], w1_ref[...], preferred_element_type=jnp.float32)
    h_ref[...] = h.astype(h_ref.dtype)                     # materialize h (reused in pass 2)
    psum_ref[...] = jnp.sum(h, axis=0, keepdims=True)      # per-tile sum
    pssq_ref[...] = jnp.sum(h * h, axis=0, keepdims=True)  # per-tile sum of squares


# ----------------------------------------------------------------------------
# Pass 2: BN affine -> (Dropout=identity) -> ReLU -> Linear2 -> Sigmoid.
# Consumes the materialized h (no recomputation of x @ W1).
# ----------------------------------------------------------------------------
def mlp_fwd_kernel(h_ref, scale_ref, shift_ref, w2_ref, b2_ref, o_ref):
    h = h_ref[...].astype(jnp.float32) * scale_ref[...] + shift_ref[...]
    h = jnp.maximum(h, 0.0)                                # Dropout(eval) + ReLU
    y = jnp.dot(h.astype(w2_ref.dtype), w2_ref[...],
                preferred_element_type=jnp.float32) + b2_ref[...]
    o_ref[...] = jax.nn.sigmoid(y).astype(o_ref.dtype)     # act_func = Sigmoid (EUP)


@functools.partial(jax.jit, static_argnames=("eps", "row_tile", "use_bf16_matmul"))
def mlp_forward(x, w1, b1, gamma, beta, w2, b2, *, eps=1e-5, row_tile=512,
                use_bf16_matmul=False):
    """Forward pass of MLP(input_dim, output_dim, hidden_dim_1, dropout, Sigmoid)."""
    del b1  # Exactly cancelled by BatchNorm's per-column mean subtraction.

    n, din = x.shape
    hdim = w1.shape[1]
    dout = w2.shape[1]
    f32 = jnp.float32
    out_dtype = x.dtype  # emit output in the caller's dtype

    # Optional: cast f32 operands to bf16 once for 2-4x MXU throughput
    # (f32 accumulation kept). Off by default to preserve f32 numerics.
    if use_bf16_matmul and x.dtype == jnp.float32:
        x = x.astype(jnp.bfloat16)
        w1 = w1.astype(jnp.bfloat16)
        w2 = w2.astype(jnp.bfloat16)

    h_dtype = x.dtype  # materialized h in the activation dtype (bf16 when caller is bf16)

    # Lane-dense (128) padding for feature dims, sublane (8) padding for rows.
    din_p = _round_up(din, 128)
    h_p = _round_up(hdim, 128)
    dout_p = _round_up(dout, 128)
    n_rows = _round_up(n, 8)

    xb = jnp.dtype(x.dtype).itemsize
    wb = jnp.dtype(w1.dtype).itemsize
    hb = jnp.dtype(h_dtype).itemsize
    ob = jnp.dtype(out_dtype).itemsize
    f32b = 4

    budget = _vmem_budget_bytes()

    def vmem_needed(tm):
        # Pass 1: x tile (x2 bufs) + resident W1 + h out (x2) + partial outs + f32 temp.
        p1 = (2 * tm * din_p * xb
              + _RESIDENT_BUFS * din_p * h_p * wb
              + 2 * tm * h_p * hb
              + 2 * 2 * h_p * f32b
              + tm * h_p * f32b)
        # Pass 2: h tile (x2) + resident scale/shift/W2/b2 + out (x2) + f32 temps.
        p2 = (2 * tm * h_p * hb
              + _RESIDENT_BUFS * (h_p * dout_p * wb + 2 * h_p * f32b + dout_p * f32b)
              + 2 * tm * dout_p * ob
              + tm * h_p * f32b + tm * dout_p * f32b)
        return max(p1, p2)

    # Row tile: as large as the budget allows (multiple of 8); when there is enough
    # work, keep at least 2 batch tiles so both TensorCores are used on v7x.
    tm = min(row_tile, n_rows)
    if n_rows >= 128:
        tm = min(tm, _round_up((n_rows + 1) // 2, 8))
    tm = _round_up(tm, 8)
    while tm > 8 and vmem_needed(tm) > budget:
        tm = _round_up(tm // 2, 8)

    n_p = _round_up(n_rows, tm)
    g = n_p // tm
    grid = (g,)
    vmem_limit = int(min(budget, max(vmem_needed(tm) + (8 << 20), 32 << 20)))

    # Zero padding is exact: padded x rows / W1 columns contribute 0 to the stats, and
    # padded hidden / output columns are killed by zero gamma / beta / W2 / b2 padding.
    xp = _pad2d(x, n_p, din_p)
    w1p = _pad2d(w1, din_p, h_p)
    w2p = _pad2d(w2, h_p, dout_p)
    b2p = _pad2d(b2.reshape(1, -1).astype(f32), 1, dout_p)
    gammap = _pad2d(gamma.reshape(1, -1).astype(f32), 1, h_p)
    betap = _pad2d(beta.reshape(1, -1).astype(f32), 1, h_p)

    # ---- Pass 1: h = x @ W1 (stored) + per-tile partial BN statistics ----
    flops1 = 2 * n_p * din_p * h_p
    bytes1 = (n_p * din_p * xb + din_p * h_p * wb
              + n_p * h_p * hb + 2 * g * h_p * f32b)
    h_mat, psum, pssq = pl.pallas_call(
        bn_stats_kernel,
        out_shape=(jax.ShapeDtypeStruct((n_p, h_p), h_dtype),
                   jax.ShapeDtypeStruct((g, h_p), f32),
                   jax.ShapeDtypeStruct((g, h_p), f32)),
        grid=grid,
        in_specs=[
            pl.BlockSpec((tm, din_p), lambda i: (i, 0)),    # x tile (pipelined)
            pl.BlockSpec((din_p, h_p), lambda i: (0, 0)),   # W1 resident (DMA'd once)
        ],
        out_specs=(
            pl.BlockSpec((tm, h_p), lambda i: (i, 0)),      # materialized h
            pl.BlockSpec((1, h_p), lambda i: (i, 0)),       # per-tile sum
            pl.BlockSpec((1, h_p), lambda i: (i, 0)),       # per-tile sum of squares
        ),
        compiler_params=pltpu.CompilerParams(
            dimension_semantics=("parallel",),
            vmem_limit_bytes=vmem_limit),
        cost_estimate=pl.CostEstimate(
            flops=flops1, transcendentals=0, bytes_accessed=bytes1),
    )(xp, w1p)

    # Fold BN (batch mean, biased variance, gamma, beta) into one affine. Tiny (1, H).
    h_sum = jnp.sum(psum, axis=0, keepdims=True)
    h_ssq = jnp.sum(pssq, axis=0, keepdims=True)
    mean = h_sum / n
    var = jnp.maximum(h_ssq / n - mean * mean, 0.0)  # one-pass; f32 accumulation
    inv_std = jax.lax.rsqrt(var + eps)
    scale = gammap * inv_std                          # zero on padded hidden columns
    shift = betap - mean * scale

    # ---- Pass 2: BN affine -> ReLU -> Linear2 -> Sigmoid over independent tiles ----
    flops2 = 2 * n_p * h_p * dout_p + 4 * n_p * h_p
    bytes2 = (n_p * h_p * hb + h_p * dout_p * wb
              + (2 * h_p + dout_p) * f32b + n_p * dout_p * ob)
    out_p = pl.pallas_call(
        mlp_fwd_kernel,
        out_shape=jax.ShapeDtypeStruct((n_p, dout_p), out_dtype),
        grid=grid,
        in_specs=[
            pl.BlockSpec((tm, h_p), lambda i: (i, 0)),      # h tile (pipelined)
            pl.BlockSpec((1, h_p), lambda i: (0, 0)),       # BN scale resident
            pl.BlockSpec((1, h_p), lambda i: (0, 0)),       # BN shift resident
            pl.BlockSpec((h_p, dout_p), lambda i: (0, 0)),  # W2 resident
            pl.BlockSpec((1, dout_p), lambda i: (0, 0)),    # b2 resident
        ],
        out_specs=pl.BlockSpec((tm, dout_p), lambda i: (i, 0)),  # lane-dense output
        compiler_params=pltpu.CompilerParams(
            dimension_semantics=("parallel",),
            vmem_limit_bytes=vmem_limit),
        cost_estimate=pl.CostEstimate(
            flops=flops2, transcendentals=n_p * dout_p, bytes_accessed=bytes2),
    )(h_mat, scale, shift, w2p, b2p)

    return out_p[:n, :dout]


def init_params(key, input_dim, hidden_dim_1, output_dim):
    k1, k2, k3, k4, k5, k6 = jax.random.split(key, 6)
    bound1 = 1.0 / (input_dim ** 0.5)
    bound2 = 1.0 / (hidden_dim_1 ** 0.5)
    w1 = jax.random.uniform(k1, (input_dim, hidden_dim_1), jnp.float32, -bound1, bound1)
    b1 = jax.random.uniform(k2, (1, hidden_dim_1), jnp.float32, -bound1, bound1)
    # PyTorch inits gamma=1 / beta=0; perturb deterministically to exercise the BN path.
    gamma = 1.0 + 0.1 * jax.random.normal(k5, (1, hidden_dim_1), jnp.float32)
    beta = 0.1 * jax.random.normal(k6, (1, hidden_dim_1), jnp.float32)
    w2 = jax.random.uniform(k3, (hidden_dim_1, output_dim), jnp.float32, -bound2, bound2)
    b2 = jax.random.uniform(k4, (1, output_dim), jnp.float32, -bound2, bound2)
    return w1, b1, gamma, beta, w2, b2


if __name__ == "__main__":
    key = jax.random.PRNGKey(0)
    k_x, k_p = jax.random.split(key)

    batch = 8
    input_dim = 32
    hidden_dim_1 = 64
    output_dim = 16

    x = jax.random.normal(k_x, (batch, input_dim), jnp.float32)
    w1, b1, gamma, beta, w2, b2 = init_params(k_p, input_dim, hidden_dim_1, output_dim)

    out = mlp_forward(x, w1, b1, gamma, beta, w2, b2)
    out = jax.block_until_ready(out)

    # Pure-JAX reference (PyTorch-faithful math, including b1 which BN cancels).
    h = x @ w1 + b1
    mean = jnp.mean(h, axis=0, keepdims=True)
    var = jnp.mean((h - mean) ** 2, axis=0, keepdims=True)
    hn = (h - mean) * jax.lax.rsqrt(var + 1e-5) * gamma + beta
    ref = jax.nn.sigmoid(jnp.maximum(hn, 0.0) @ w2 + b2)

    assert out.shape == ref.shape, f"shape mismatch {out.shape} vs {ref.shape}"
    assert out.dtype == x.dtype, f"dtype mismatch {out.dtype} vs {x.dtype}"
    assert jnp.allclose(out, ref, atol=2e-5, rtol=2e-5), "mismatch vs reference"

    print("KERNEL_OK")
</pallas_src>

<mosaic_0001>
module attributes {stable_mosaic.version = 11 : i64} {
  func.func @bn_stats_kernel(%arg0: i32, %arg1: memref<8x128xf32, #tpu.memory_space<vmem>>, %arg2: memref<128x128xf32, #tpu.memory_space<vmem>>, %arg3: memref<8x128xf32, #tpu.memory_space<vmem>>, %arg4: memref<1x128xf32, #tpu.memory_space<vmem>>, %arg5: memref<1x128xf32, #tpu.memory_space<vmem>>) attributes {dimension_semantics = [#tpu.dimension_semantics<parallel>], iteration_bounds = array<i64: 1>, scalar_prefetch = 0 : i64, scratch_operands = 0 : i64, tpu.core_type = #tpu.core_type<tc>, window_params = [{transform_indices = @transform_0, window_bounds = array<i64: 8, 128>}, {pipeline_mode = #tpu.pipeline_mode<synchronous>, transform_indices = @transform_1, window_bounds = array<i64: 128, 128>}, {transform_indices = @transform_2, window_bounds = array<i64: 8, 128>}, {transform_indices = @transform_3, window_bounds = array<i64: 1, 128>}, {transform_indices = @transform_4, window_bounds = array<i64: 1, 128>}]} {
    %c0 = arith.constant 0 : index
    %c0_0 = arith.constant 0 : index
    %0 = vector.load %arg1[%c0, %c0_0] : memref<8x128xf32, #tpu.memory_space<vmem>>, vector<8x128xf32>
    %c0_1 = arith.constant 0 : index
    %c0_2 = arith.constant 0 : index
    %1 = vector.load %arg2[%c0_1, %c0_2] : memref<128x128xf32, #tpu.memory_space<vmem>>, vector<128x128xf32>
    %cst = arith.constant dense<0.000000e+00> : vector<8x128xf32>
    %2 = tpu.matmul %0, %1, %cst {dimension_numbers = #tpu.dot_dimension_numbers<[1], [0], [0], [1], [0, 0, 1, 1], [], []>} : vector<8x128xf32>, vector<128x128xf32>, vector<8x128xf32> -> vector<8x128xf32>
    %c0_3 = arith.constant 0 : index
    %c0_4 = arith.constant 0 : index
    %3 = vector.load %arg3[%c0_3, %c0_4] : memref<8x128xf32, #tpu.memory_space<vmem>>, vector<8x128xf32>
    tpu.vector_store %arg3[%c0_3, %c0_4], %2 {strides = array<i32>} : memref<8x128xf32, #tpu.memory_space<vmem>>, vector<8x128xf32>,
    %cst_5 = arith.constant dense<0.000000e+00> : vector<128xf32>
    %4 = vector.multi_reduction <add>, %2, %cst_5 [0] : vector<8x128xf32> to vector<128xf32>
    %5 = vector.shape_cast %4 : vector<128xf32> to vector<1x128xf32>
    %c0_6 = arith.constant 0 : index
    %c0_7 = arith.constant 0 : index
    %6 = vector.load %arg4[%c0_6, %c0_7] : memref<1x128xf32, #tpu.memory_space<vmem>>, vector<1x128xf32>
    tpu.vector_store %arg4[%c0_6, %c0_7], %5 {strides = array<i32>} : memref<1x128xf32, #tpu.memory_space<vmem>>, vector<1x128xf32>,
    %7 = arith.mulf %2, %2 : vector<8x128xf32>
    %cst_8 = arith.constant dense<0.000000e+00> : vector<128xf32>
    %8 = vector.multi_reduction <add>, %7, %cst_8 [0] : vector<8x128xf32> to vector<128xf32>
    %9 = vector.shape_cast %8 : vector<128xf32> to vector<1x128xf32>
    %c0_9 = arith.constant 0 : index
    %c0_10 = arith.constant 0 : index
    %10 = vector.load %arg5[%c0_9, %c0_10] : memref<1x128xf32, #tpu.memory_space<vmem>>, vector<1x128xf32>
    tpu.vector_store %arg5[%c0_9, %c0_10], %9 {strides = array<i32>} : memref<1x128xf32, #tpu.memory_space<vmem>>, vector<1x128xf32>,
    return
  }
  func.func @transform_0(%arg0: i32) -> (i32, i32) {
    %c0_i32 = arith.constant 0 : i32
    %c0_i32_0 = arith.constant 0 : i32
    return %arg0, %c0_i32 : i32, i32
  }
  func.func @transform_1(%arg0: i32) -> (i32, i32) {
    %c0_i32 = arith.constant 0 : i32
    %c0_i32_0 = arith.constant 0 : i32
    %c0_i32_1 = arith.constant 0 : i32
    return %c0_i32, %c0_i32_0 : i32, i32
  }
  func.func @transform_2(%arg0: i32) -> (i32, i32) {
    %c0_i32 = arith.constant 0 : i32
    %c0_i32_0 = arith.constant 0 : i32
    return %arg0, %c0_i32 : i32, i32
  }
  func.func @transform_3(%arg0: i32) -> (i32, i32) {
    %c0_i32 = arith.constant 0 : i32
    %c0_i32_0 = arith.constant 0 : i32
    return %arg0, %c0_i32 : i32, i32
  }
  func.func @transform_4(%arg0: i32) -> (i32, i32) {
    %c0_i32 = arith.constant 0 : i32
    %c0_i32_0 = arith.constant 0 : i32
    return %arg0, %c0_i32 : i32, i32
  }
}

module attributes {stable_mosaic.version = 11 : i64} {
  func.func @mlp_fwd_kernel(%arg0: i32, %arg1: memref<8x128xf32, #tpu.memory_space<vmem>>, %arg2: memref<1x128xf32, #tpu.memory_space<vmem>>, %arg3: memref<1x128xf32, #tpu.memory_space<vmem>>, %arg4: memref<128x128xf32, #tpu.memory_space<vmem>>, %arg5: memref<1x128xf32, #tpu.memory_space<vmem>>, %arg6: memref<8x128xf32, #tpu.memory_space<vmem>>) attributes {dimension_semantics = [#tpu.dimension_semantics<parallel>], iteration_bounds = array<i64: 1>, scalar_prefetch = 0 : i64, scratch_operands = 0 : i64, tpu.core_type = #tpu.core_type<tc>, window_params = [{transform_indices = @transform_0, window_bounds = array<i64: 8, 128>}, {pipeline_mode = #tpu.pipeline_mode<synchronous>, transform_indices = @transform_1, window_bounds = array<i64: 1, 128>}, {pipeline_mode = #tpu.pipeline_mode<synchronous>, transform_indices = @transform_2, window_bounds = array<i64: 1, 128>}, {pipeline_mode = #tpu.pipeline_mode<synchronous>, transform_indices = @transform_3, window_bounds = array<i64: 128, 128>}, {pipeline_mode = #tpu.pipeline_mode<synchronous>, transform_indices = @transform_4, window_bounds = array<i64: 1, 128>}, {transform_indices = @transform_5, window_bounds = array<i64: 8, 128>}]} {
    %c0 = arith.constant 0 : index
    %c0_0 = arith.constant 0 : index
    %0 = vector.load %arg1[%c0, %c0_0] : memref<8x128xf32, #tpu.memory_space<vmem>>, vector<8x128xf32>
    %c0_1 = arith.constant 0 : index
    %c0_2 = arith.constant 0 : index
    %1 = vector.load %arg2[%c0_1, %c0_2] : memref<1x128xf32, #tpu.memory_space<vmem>>, vector<1x128xf32>
    %2 = vector.broadcast %1 : vector<1x128xf32> to vector<8x128xf32>
    %3 = arith.mulf %0, %2 : vector<8x128xf32>
    %c0_3 = arith.constant 0 : index
    %c0_4 = arith.constant 0 : index
    %4 = vector.load %arg3[%c0_3, %c0_4] : memref<1x128xf32, #tpu.memory_space<vmem>>, vector<1x128xf32>
    %5 = vector.broadcast %4 : vector<1x128xf32> to vector<8x128xf32>
    %6 = arith.addf %3, %5 : vector<8x128xf32>
    %cst = arith.constant 0.000000e+00 : f32
    %7 = vector.broadcast %cst : f32 to vector<8x128xf32>
    %8 = arith.maximumf %6, %7 : vector<8x128xf32>
    %c0_5 = arith.constant 0 : index
    %c0_6 = arith.constant 0 : index
    %9 = vector.load %arg4[%c0_5, %c0_6] : memref<128x128xf32, #tpu.memory_space<vmem>>, vector<128x128xf32>
    %cst_7 = arith.constant dense<0.000000e+00> : vector<8x128xf32>
    %10 = tpu.matmul %8, %9, %cst_7 {dimension_numbers = #tpu.dot_dimension_numbers<[1], [0], [0], [1], [0, 0, 1, 1], [], []>} : vector<8x128xf32>, vector<128x128xf32>, vector<8x128xf32> -> vector<8x128xf32>
    %c0_8 = arith.constant 0 : index
    %c0_9 = arith.constant 0 : index
    %11 = vector.load %arg5[%c0_8, %c0_9] : memref<1x128xf32, #tpu.memory_space<vmem>>, vector<1x128xf32>
    %12 = vector.broadcast %11 : vector<1x128xf32> to vector<8x128xf32>
    %13 = arith.addf %10, %12 : vector<8x128xf32>
    %14 = arith.negf %13 : vector<8x128xf32>
    %15 = math.exp %14 : vector<8x128xf32>
    %cst_10 = arith.constant 1.000000e+00 : f32
    %16 = vector.broadcast %cst_10 : f32 to vector<8x128xf32>
    %17 = arith.addf %16, %15 : vector<8x128xf32>
    %18 = arith.divf %16, %17 : vector<8x128xf32>
    %c0_11 = arith.constant 0 : index
    %c0_12 = arith.constant 0 : index
    %19 = vector.load %arg6[%c0_11, %c0_12] : memref<8x128xf32, #tpu.memory_space<vmem>>, vector<8x128xf32>
    tpu.vector_store %arg6[%c0_11, %c0_12], %18 {strides = array<i32>} : memref<8x128xf32, #tpu.memory_space<vmem>>, vector<8x128xf32>,
    return
  }
  func.func @transform_0(%arg0: i32) -> (i32, i32) {
    %c0_i32 = arith.constant 0 : i32
    %c0_i32_0 = arith.constant 0 : i32
    return %arg0, %c0_i32 : i32, i32
  }
  func.func @transform_1(%arg0: i32) -> (i32, i32) {
    %c0_i32 = arith.constant 0 : i32
    %c0_i32_0 = arith.constant 0 : i32
    %c0_i32_1 = arith.constant 0 : i32
    return %c0_i32, %c0_i32_0 : i32, i32
  }
  func.func @transform_2(%arg0: i32) -> (i32, i32) {
    %c0_i32 = arith.constant 0 : i32
    %c0_i32_0 = arith.constant 0 : i32
    %c0_i32_1 = arith.constant 0 : i32
    return %c0_i32, %c0_i32_0 : i32, i32
  }
  func.func @transform_3(%arg0: i32) -> (i32, i32) {
    %c0_i32 = arith.constant 0 : i32
    %c0_i32_0 = arith.constant 0 : i32
    %c0_i32_1 = arith.constant 0 : i32
    return %c0_i32, %c0_i32_0 : i32, i32
  }
  func.func @transform_4(%arg0: i32) -> (i32, i32) {
    %c0_i32 = arith.constant 0 : i32
    %c0_i32_0 = arith.constant 0 : i32
    %c0_i32_1 = arith.constant 0 : i32
    return %c0_i32, %c0_i32_0 : i32, i32
  }
  func.func @transform_5(%arg0: i32) -> (i32, i32) {
    %c0_i32 = arith.constant 0 : i32
    %c0_i32_0 = arith.constant 0 : i32
    return %arg0, %c0_i32 : i32, i32
  }
}

</mosaic_0001>

<llo_original>
// kernel: mlp_forward.3
$region0: #{mlp_forward.3}
  #allocation0 [shape = 'u32[]', space=smem, size = 0x4, offset = 0x4, fixed_abs, tag = 'smem constant byte address 0x4 - core index']
  #allocation1 [shape = 'u32[144,128]{1,0:T(1,128)}', space=vmem, size = 0x12000, scoped, tag = 'internal scratch']
  %s0 = inlined_call_operand.vmem [shape: f32[8,128], index: 0, kind: input, shape index: {}]
  %s1 = inlined_call_operand.vmem [shape: f32[1,128], index: 1, kind: input, shape index: {}]
  %s2 = inlined_call_operand.vmem [shape: f32[1,128], index: 2, kind: input, shape index: {}]
  %s3 = inlined_call_operand.vmem [shape: f32[128,128], index: 3, kind: input, shape index: {}]
  %s4 = inlined_call_operand.vmem [shape: f32[1,128], index: 4, kind: input, shape index: {}]
  %s5 = inlined_call_operand.hbm [shape: f32[8,128], index: 5, kind: output, shape index: {}]
  %s6 = sld [smem:[#allocation0]]
  $region30: #{mlp_forward.3} parent=0
    _
  %s8 = ssub.s32 1, %s6
  %s9 = scalar_select 0, %s8, %s6
  $region1: #{mlp_forward.3} parent=0
    #allocation2 [shape = 'u8[4096]{0}', space=vmem, size = 0x1000, scoped, tag = 'output window, operand 0, single buffered']
    #allocation3 [shape = 's32[1]{0}', space=sflag, size = 0x4, scoped, tag = 'scoped memory for mlp_forward.3']
    %10 = vsyncpa [#allocation3], 0
    // Predicated region
    $region2: #{mlp_forward.3} parent=1 // pred_check
      _
    $region3: #{mlp_forward.3} parent=1 // pred_check_branch
      %12 = sbr.rel (0) target = $region5
    $region4: #{mlp_forward.3} parent=1 // pred_region
      _
    $region5: #{mlp_forward.3} parent=1 // pred_fallthru
      _
    // Predicated region
    $region6: #{mlp_forward.3} parent=1 // pred_check
      _
    $region7: #{mlp_forward.3} parent=1 // pred_check_branch
      %14 = sbr.rel (0) target = $region9
    $region8: #{mlp_forward.3} parent=1 // pred_region
      _
    $region9: #{mlp_forward.3} parent=1 // pred_fallthru
      _
    // Predicated region
    $region10: #{mlp_forward.3} parent=1 // pred_check
      _
    $region11: #{mlp_forward.3} parent=1 // pred_check_branch
      %16 = sbr.rel (0) target = $region13
    $region12: #{mlp_forward.3} parent=1 // pred_region
      _
    $region13: #{mlp_forward.3} parent=1 // pred_fallthru
      _
    // Predicated region
    $region14: #{mlp_forward.3} parent=1 // pred_check
      _
    $region15: #{mlp_forward.3} parent=1 // pred_check_branch
      %18 = sbr.rel (0) target = $region17
    $region16: #{mlp_forward.3} parent=1 // pred_region
      _
    $region17: #{mlp_forward.3} parent=1 // pred_fallthru
      _
    // Predicated region
    $region18: #{mlp_forward.3} parent=1 // pred_check
      _
    $region19: #{mlp_forward.3} parent=1 // pred_check_branch
      %20 = sbr.rel (0) target = $region21
    $region20: #{mlp_forward.3} parent=1 // pred_region
      _
    $region21: #{mlp_forward.3} parent=1 // pred_fallthru
      _
    %v21 = vld [vmem:[%s0] sm:$0xff]
    %v22 = vld [vmem:[%s1] sm:$0x1]
    %v24 = vlaneseq
    %v25 = vshrl.u32 %v24, 7
    %v26 = vsub.s32 0, %v25
    %v27 = vrot.slane %v22, %v26
    %v29 = vmul.f32 %v21, %v27
    %v30 = vld [vmem:[%s2] sm:$0x1]
    %v32 = vlaneseq
    %v33 = vshrl.u32 %v32, 7
    %v34 = vsub.s32 0, %v33
    %v35 = vrot.slane %v30, %v34
    %v37 = vadd.f32 %v29, %v35
    %v38 = vmax.f32 %v37, 0.0
    %v39 = vld [vmem:[%s3] sm:$0xff]
    %v40 = vld [vmem:[%s3 + $0x8] sm:$0xff]
    %v41 = vld [vmem:[%s3 + $0x10] sm:$0xff]
    %v42 = vld [vmem:[%s3 + $0x18] sm:$0xff]
    %v43 = vld [vmem:[%s3 + $0x20] sm:$0xff]
    %v44 = vld [vmem:[%s3 + $0x28] sm:$0xff]
    %v45 = vld [vmem:[%s3 + $0x30] sm:$0xff]
    %v46 = vld [vmem:[%s3 + $0x38] sm:$0xff]
    %v47 = vld [vmem:[%s3 + $0x40] sm:$0xff]
    %v48 = vld [vmem:[%s3 + $0x48] sm:$0xff]
    %v49 = vld [vmem:[%s3 + $0x50] sm:$0xff]
    %v50 = vld [vmem:[%s3 + $0x58] sm:$0xff]
    %v51 = vld [vmem:[%s3 + $0x60] sm:$0xff]
    %v52 = vld [vmem:[%s3 + $0x68] sm:$0xff]
    %v53 = vld [vmem:[%s3 + $0x70] sm:$0xff]
    %v54 = vld [vmem:[%s3 + $0x78] sm:$0xff]
    %v55 = vld [vmem:[%s4] sm:$0x1]
    %v57 = vlaneseq
    %v58 = vshrl.u32 %v57, 7
    %v59 = vsub.s32 0, %v58
    %v60 = vrot.slane %v55, %v59
    %62 = vmatprep.subr.mxu0 0.0
    %63 = vmatpush1.msra.mxu0 %v39
    %64 = vmatprep.subr.mxu0 0.0
    %65 = vmatpush1.msra.mxu0 %v40
    %66 = vmatprep.subr.mxu0 0.0
    %67 = vmatpush1.msra.mxu0 %v41
    %68 = vmatprep.subr.mxu0 0.0
    %69 = vmatpush1.msra.mxu0 %v42
    %70 = vmatprep.subr.mxu0 0.0
    %71 = vmatpush1.msra.mxu0 %v43
    %72 = vmatprep.subr.mxu0 0.0
    %73 = vmatpush1.msra.mxu0 %v44
    %74 = vmatprep.subr.mxu0 0.0
    %75 = vmatpush1.msra.mxu0 %v45
    %76 = vmatprep.subr.mxu0 0.0
    %77 = vmatpush1.msra.mxu0 %v46
    %78 = vmatprep.subr.mxu0 0.0
    %79 = vmatpush1.msra.mxu0 %v47
    %80 = vmatprep.subr.mxu0 0.0
    %81 = vmatpush1.msra.mxu0 %v48
    %82 = vmatprep.subr.mxu0 0.0
    %83 = vmatpush1.msra.mxu0 %v49
    %84 = vmatprep.subr.mxu0 0.0
    %85 = vmatpush1.msra.mxu0 %v50
    %86 = vmatprep.subr.mxu0 0.0
    %87 = vmatpush1.msra.mxu0 %v51
    %88 = vmatprep.subr.mxu0 0.0
    %89 = vmatpush1.msra.mxu0 %v52
    %90 = vmatprep.subr.mxu0 0.0
    %91 = vmatpush1.msra.mxu0 %v53
    %92 = vmatprep.subr.mxu0 0.0
    %93 = vmatpush1.msra.mxu0 %v54
    %94 = vmatprep.subr.mxu0 0.0
    %95 = vmatpush1.msra.mxu0 0.0
    %96 = vmatprep.subr.mxu0 0.0
    %97 = vmatpush1.msra.mxu0 0.0
    %98 = vmatprep.subr.mxu0 0.0
    %99 = vmatpush1.msra.mxu0 0.0
    %100 = vmatprep.subr.mxu0 0.0
    %101 = vmatpush1.msra.mxu0 0.0
    %102 = vmatprep.subr.mxu0 0.0
    %103 = vmatpush1.msra.mxu0 0.0
    %104 = vmatprep.subr.mxu0 0.0
    %105 = vmatpush1.msra.mxu0 0.0
    %106 = vmatprep.subr.mxu0 0.0
    %107 = vmatpush1.msra.mxu0 0.0
    %108 = vmatprep.subr.mxu0 0.0
    %109 = vmatpush1.msra.mxu0 0.0
    %110 = vmatprep.subr.mxu0 0.0
    %111 = vmatpush1.msra.mxu0 0.0
    %112 = vmatprep.subr.mxu0 0.0
    %113 = vmatpush1.msra.mxu0 0.0
    %114 = vmatprep.subr.mxu0 0.0
    %115 = vmatpush1.msra.mxu0 0.0
    %116 = vmatprep.subr.mxu0 0.0
    %117 = vmatpush1.msra.mxu0 0.0
    %118 = vmatprep.subr.mxu0 0.0
    %119 = vmatpush1.msra.mxu0 0.0
    %120 = vmatprep.subr.mxu0 0.0
    %121 = vmatpush1.msra.mxu0 0.0
    %122 = vmatprep.subr.mxu0 0.0
    %123 = vmatpush1.msra.mxu0 0.0
    %124 = vmatprep.subr.mxu0 0.0
    %125 = vmatpush1.msra.mxu0 0.0
    %126 = vmatprep.mubr.f32.mxu0 0.0
    %127 = vmatmul.mubr.f32.gmra.mrb[0].mxu0 %v38
    %v128 = vpop.f32.mrb[0].mxu0
    %v129 = vadd.f32 %v60, %v128
    %v130 = vpop.f32.mrb[0].mxu0
    %131 = vdwg.mxu0
    %v132 = vxor.u32 %v129, 2147483648
    %v133 = vmul.f32 %v132, 1.442695
    %v134 = vpow.pop %v133
    %v135 = vadd.f32 %v134, 1.0
    %v136 = vrcp.pop %v135
    %v137 = vmul.f32 1.0, %v136
    %138 = vst [vmem:[#allocation2] sm:$0xff] %v137
    // Predicated region
    $region22: #{mlp_forward.3} parent=1 // pred_check
      _
    $region23: #{mlp_forward.3} parent=1 // pred_check_branch
      %140 = sbr.rel (0) target = $region25
    $region24: #{mlp_forward.3} parent=1 // pred_region
      %s142 = ssub.s32 128, 128
      %143 = vsyncadd [#allocation3], %s142
      %s145 = sshll.u32 [#allocation2], 4
      %s146 = int_to_ptr.vmem [resolvable:$true] %s145
      %148 = dma.vmem_to_hbm [thread:$0]  %s146, 128, %s5, [#allocation3]
    $region25: #{mlp_forward.3} parent=1 // pred_fallthru
      _
    // Predicated region
    $region26: #{mlp_forward.3} parent=1 // pred_check
      _
    $region27: #{mlp_forward.3} parent=1 // pred_check_branch
      %150 = sbr.rel (0) target = $region29
    $region28: #{mlp_forward.3} parent=1 // pred_region
      %151 = dma.done [#allocation3], 128
    $region29: #{mlp_forward.3} parent=1 // pred_fallthru
      _
    %152 = vsyncpa [#allocation3], 1

// kernel: mlp_forward.2
$region0: #{mlp_forward.2}
  #allocation0 [shape = 'u32[]', space=smem, size = 0x4, offset = 0x4, fixed_abs, tag = 'smem constant byte address 0x4 - core index']
  #allocation1 [shape = 'u32[144,128]{1,0:T(1,128)}', space=vmem, size = 0x12000, scoped, tag = 'internal scratch']
  %s0 = inlined_call_operand.vmem [shape: f32[8,128], index: 0, kind: input, shape index: {}]
  %s1 = inlined_call_operand.vmem [shape: f32[128,128], index: 1, kind: input, shape index: {}]
  %s2 = inlined_call_operand.vmem [shape: f32[8,128], index: 2, kind: output, shape index: {0}]
  %s3 = inlined_call_operand.vmem [shape: f32[1,128], index: 3, kind: output, shape index: {1}]
  %s4 = inlined_call_operand.vmem [shape: f32[1,128], index: 4, kind: output, shape index: {2}]
  %5 = xla_tuple %s2, %s3, %s4
  %s6 = sld [smem:[#allocation0]]
  $region34: #{mlp_forward.2} parent=0
    _
  %s8 = ssub.s32 1, %s6
  %s9 = scalar_select 0, %s8, %s6
  // Predicated region
  $region2: #{mlp_forward.2} parent=0 // pred_check
    _
  $region3: #{mlp_forward.2} parent=0 // pred_check_branch
    %11 = sbr.rel (0) target = $region5
  $region4: #{mlp_forward.2} parent=0 // pred_region
    _
  $region5: #{mlp_forward.2} parent=0 // pred_fallthru
    _
  // Predicated region
  $region6: #{mlp_forward.2} parent=0 // pred_check
    _
  $region7: #{mlp_forward.2} parent=0 // pred_check_branch
    %13 = sbr.rel (0) target = $region9
  $region8: #{mlp_forward.2} parent=0 // pred_region
    _
  $region9: #{mlp_forward.2} parent=0 // pred_fallthru
    _
  %v14 = vld [vmem:[%s0] sm:$0xff]
  %v15 = vld [vmem:[%s1] sm:$0xff]
  %v16 = vld [vmem:[%s1 + $0x8] sm:$0xff]
  %v17 = vld [vmem:[%s1 + $0x10] sm:$0xff]
  %v18 = vld [vmem:[%s1 + $0x18] sm:$0xff]
  %v19 = vld [vmem:[%s1 + $0x20] sm:$0xff]
  %v20 = vld [vmem:[%s1 + $0x28] sm:$0xff]
  %v21 = vld [vmem:[%s1 + $0x30] sm:$0xff]
  %v22 = vld [vmem:[%s1 + $0x38] sm:$0xff]
  %v23 = vld [vmem:[%s1 + $0x40] sm:$0xff]
  %v24 = vld [vmem:[%s1 + $0x48] sm:$0xff]
  %v25 = vld [vmem:[%s1 + $0x50] sm:$0xff]
  %v26 = vld [vmem:[%s1 + $0x58] sm:$0xff]
  %v27 = vld [vmem:[%s1 + $0x60] sm:$0xff]
  %v28 = vld [vmem:[%s1 + $0x68] sm:$0xff]
  %v29 = vld [vmem:[%s1 + $0x70] sm:$0xff]
  %v30 = vld [vmem:[%s1 + $0x78] sm:$0xff]
  %31 = vmatprep.subr.mxu0 0.0
  %32 = vmatpush1.msra.mxu0 %v15
  %33 = vmatprep.subr.mxu0 0.0
  %34 = vmatpush1.msra.mxu0 %v16
  %35 = vmatprep.subr.mxu0 0.0
  %36 = vmatpush1.msra.mxu0 %v17
  %37 = vmatprep.subr.mxu0 0.0
  %38 = vmatpush1.msra.mxu0 %v18
  %39 = vmatprep.subr.mxu0 0.0
  %40 = vmatpush1.msra.mxu0 %v19
  %41 = vmatprep.subr.mxu0 0.0
  %42 = vmatpush1.msra.mxu0 %v20
  %43 = vmatprep.subr.mxu0 0.0
  %44 = vmatpush1.msra.mxu0 %v21
  %45 = vmatprep.subr.mxu0 0.0
  %46 = vmatpush1.msra.mxu0 %v22
  %47 = vmatprep.subr.mxu0 0.0
  %48 = vmatpush1.msra.mxu0 %v23
  %49 = vmatprep.subr.mxu0 0.0
  %50 = vmatpush1.msra.mxu0 %v24
  %51 = vmatprep.subr.mxu0 0.0
  %52 = vmatpush1.msra.mxu0 %v25
  %53 = vmatprep.subr.mxu0 0.0
  %54 = vmatpush1.msra.mxu0 %v26
  %55 = vmatprep.subr.mxu0 0.0
  %56 = vmatpush1.msra.mxu0 %v27
  %57 = vmatprep.subr.mxu0 0.0
  %58 = vmatpush1.msra.mxu0 %v28
  %59 = vmatprep.subr.mxu0 0.0
  %60 = vmatpush1.msra.mxu0 %v29
  %61 = vmatprep.subr.mxu0 0.0
  %62 = vmatpush1.msra.mxu0 %v30
  %63 = vmatprep.subr.mxu0 0.0
  %64 = vmatpush1.msra.mxu0 0.0
  %65 = vmatprep.subr.mxu0 0.0
  %66 = vmatpush1.msra.mxu0 0.0
  %67 = vmatprep.subr.mxu0 0.0
  %68 = vmatpush1.msra.mxu0 0.0
  %69 = vmatprep.subr.mxu0 0.0
  %70 = vmatpush1.msra.mxu0 0.0
  %71 = vmatprep.subr.mxu0 0.0
  %72 = vmatpush1.msra.mxu0 0.0
  %73 = vmatprep.subr.mxu0 0.0
  %74 = vmatpush1.msra.mxu0 0.0
  %75 = vmatprep.subr.mxu0 0.0
  %76 = vmatpush1.msra.mxu0 0.0
  %77 = vmatprep.subr.mxu0 0.0
  %78 = vmatpush1.msra.mxu0 0.0
  %79 = vmatprep.subr.mxu0 0.0
  %80 = vmatpush1.msra.mxu0 0.0
  %81 = vmatprep.subr.mxu0 0.0
  %82 = vmatpush1.msra.mxu0 0.0
  %83 = vmatprep.subr.mxu0 0.0
  %84 = vmatpush1.msra.mxu0 0.0
  %85 = vmatprep.subr.mxu0 0.0
  %86 = vmatpush1.msra.mxu0 0.0
  %87 = vmatprep.subr.mxu0 0.0
  %88 = vmatpush1.msra.mxu0 0.0
  %89 = vmatprep.subr.mxu0 0.0
  %90 = vmatpush1.msra.mxu0 0.0
  %91 = vmatprep.subr.mxu0 0.0
  %92 = vmatpush1.msra.mxu0 0.0
  %93 = vmatprep.subr.mxu0 0.0
  %94 = vmatpush1.msra.mxu0 0.0
  %95 = vmatprep.mubr.f32.mxu0 0.0
  %96 = vmatmul.mubr.f32.gmra.mrb[0].mxu0 %v14
  %v97 = vpop.f32.mrb[0].mxu0
  %v98 = vadd.f32 0.0, %v97
  %v99 = vpop.f32.mrb[0].mxu0
  %100 = vdwg.mxu0
  %101 = vst [vmem:[%s2] sm:$0xff] %v98
  %v102 = vrot.slane %v98, 4
  %v103 = vadd.f32 %v98, %v102
  %v104 = vrot.slane %v103, 2
  %v105 = vadd.f32 %v103, %v104
  %v106 = vrot.slane %v105, 1
  %v107 = vadd.f32 %v105, %v106
  %108 = vst [vmem:[%s3] sm:$0x1] %v107
  %v109 = vmul.f32 %v98, %v98
  %v110 = vrot.slane %v109, 4
  %v111 = vadd.f32 %v109, %v110
  %v112 = vrot.slane %v111, 2
  %v113 = vadd.f32 %v111, %v112
  %v114 = vrot.slane %v113, 1
  %v115 = vadd.f32 %v113, %v114
  %116 = vst [vmem:[%s4] sm:$0x1] %v115
  // Predicated region
  $region10: #{mlp_forward.2} parent=0 // pred_check
    _
  $region11: #{mlp_forward.2} parent=0 // pred_check_branch
    %118 = sbr.rel (0) target = $region13
  $region12: #{mlp_forward.2} parent=0 // pred_region
    _
  $region13: #{mlp_forward.2} parent=0 // pred_fallthru
    _
  // Predicated region
  $region14: #{mlp_forward.2} parent=0 // pred_check
    _
  $region15: #{mlp_forward.2} parent=0 // pred_check_branch
    %120 = sbr.rel (0) target = $region17
  $region16: #{mlp_forward.2} parent=0 // pred_region
    _
  $region17: #{mlp_forward.2} parent=0 // pred_fallthru
    _
  // Predicated region
  $region18: #{mlp_forward.2} parent=0 // pred_check
    _
  $region19: #{mlp_forward.2} parent=0 // pred_check_branch
    %122 = sbr.rel (0) target = $region21
  $region20: #{mlp_forward.2} parent=0 // pred_region
    _
  $region21: #{mlp_forward.2} parent=0 // pred_fallthru
    _
  // Predicated region
  $region22: #{mlp_forward.2} parent=0 // pred_check
    _
  $region23: #{mlp_forward.2} parent=0 // pred_check_branch
    %124 = sbr.rel (0) target = $region25
  $region24: #{mlp_forward.2} parent=0 // pred_region
    _
  $region25: #{mlp_forward.2} parent=0 // pred_fallthru
    _
  // Predicated region
  $region26: #{mlp_forward.2} parent=0 // pred_check
    _
  $region27: #{mlp_forward.2} parent=0 // pred_check_branch
    %126 = sbr.rel (0) target = $region29
  $region28: #{mlp_forward.2} parent=0 // pred_region
    _
  $region29: #{mlp_forward.2} parent=0 // pred_fallthru
    _
  // Predicated region
  $region30: #{mlp_forward.2} parent=0 // pred_check
    _
  $region31: #{mlp_forward.2} parent=0 // pred_check_branch
    %128 = sbr.rel (0) target = $region33
  $region32: #{mlp_forward.2} parent=0 // pred_region
    _
  $region33: #{mlp_forward.2} parent=0 // pred_fallthru
    _

</llo_original>
